<compile_context>
chip_gen: v6e
topology: v6e:2x2x1
jax: 0.10.0
libtpu: 0.0.40
codegen_flags: <defaults>
</compile_context>

<pallas_src>
import numpy as np

import jax
import jax.numpy as jnp
from jax.experimental import pallas as pl
from jax.experimental.pallas import tpu as pltpu


def _pick_batch_block(n, c, hw, budget_bytes=8 * 1024 * 1024, max_nb=512):
    """Largest divisor of n such that:
         * grid length >= 2 whenever n >= 2 (megacore split + pipeline overlap)
         * double-buffered in+out blocks (4 * NB * C * HW * 4B) fit the budget.
    """
    per_img = c * hw * 4  # f32 bytes
    cap = min(max(1, n // 2), max_nb)
    best = 1
    for nb in range(1, cap + 1):
        if n % nb == 0 and 4 * nb * per_img <= budget_bytes:
            best = nb
    return best


def _build_spatial_matrix(w_spatial, H, W):
    """Fold the KxK 'same' conv (2 -> 1 channels, zero padding, no bias) into a
    dense (2*H*W, H*W) matrix M so that, with the row-flattened pooled maps
    pool_flat = concat([avg_pool, max_pool], axis=-1) of shape (NB, 2*H*W),
        conv_out_flat = pool_flat @ M.
    Zero padding and image-border validity are baked into M (out-of-range taps
    simply contribute nothing)."""
    w = np.asarray(w_spatial, dtype=np.float32)  # (1, 2, K, K)
    K = w.shape[-1]
    P = K // 2
    HW = H * W
    M = np.zeros((2 * HW, HW), dtype=np.float32)
    for c in range(2):
        for dh in range(K):
            for dw in range(K):
                wgt = w[0, c, dh, dw]
                # output pixel (oh, ow) reads input pixel (oh+dh-P, ow+dw-P)
                ow0 = max(0, P - dw)
                ow1 = min(W, W + P - dw)
                if ow0 >= ow1:
                    continue
                ows = np.arange(ow0, ow1)
                iws = ows + dw - P
                for oh in range(H):
                    ih = oh + dh - P
                    if ih < 0 or ih >= H:
                        continue
                    M[c * HW + ih * W + iws, oh * W + ows] += wgt
    return M


def cbam_attention(x, w1, b1, w2, b2, w_spatial):
    """CBAM forward.

    x         : (N, C, H, W) float32
    w1        : (Cs, C)   conv_reduce weight (1x1 conv squeezed)
    b1        : (Cs,)     conv_reduce bias
    w2        : (C, Cs)   conv_expand weight (1x1 conv squeezed)
    b2        : (C,)      conv_expand bias
    w_spatial : (1, 2, K, K) spatial conv weight, no bias (K in {3, 7})
    """
    N, C, H, W = x.shape
    Cs = w1.shape[0]
    HW = H * W

    # TODO(synk): for large feature maps (2*HW*HW*4B more than a few MiB) switch
    # to a slab-load + pltpu.roll tap conv instead of the dense folded matrix.
    assert 2 * HW * HW * 4 <= 8 * 1024 * 1024, "dense spatial matrix too large"

    NB = _pick_batch_block(N, C, HW)

    # Lane-dense layout: last dim is H*W (free row-major reshape).
    x_flat = x.reshape(N, C, HW).astype(jnp.float32)
    b1_row = b1.reshape(1, Cs).astype(jnp.float32)
    b2_row = b2.reshape(1, C).astype(jnp.float32)
    m_mat = jnp.asarray(_build_spatial_matrix(w_spatial, H, W))   # (2*HW, HW)

    def kernel(x_ref, w1_ref, b1_ref, w2_ref, b2_ref, m_ref, o_ref):
        xv = x_ref[...]                                              # (NB, C, HW)

        # ---- Channel attention (SE-style); tiny 1x1 convs stay on the VPU ----
        pooled = jnp.mean(xv, axis=2)                                # (NB, C)
        hidden = (jnp.sum(pooled[:, None, :] * w1_ref[...][None, :, :], axis=2)
                  + b1_ref[...])                                     # (NB, Cs)
        hidden = hidden * jax.nn.sigmoid(hidden)                     # SiLU
        gate = (jnp.sum(hidden[:, None, :] * w2_ref[...][None, :, :], axis=2)
                + b2_ref[...])                                       # (NB, C)
        gate = jax.nn.sigmoid(gate)
        x_ca = xv * gate[:, :, None]                                 # (NB, C, HW)

        # ---- Spatial attention: whole KxK conv as a single MXU matmul ----
        avg_p = jnp.mean(x_ca, axis=1)                               # (NB, HW)
        max_p = jnp.max(x_ca, axis=1)                                # (NB, HW)
        pool = jnp.concatenate([avg_p, max_p], axis=-1)              # (NB, 2*HW)
        sa = jax.nn.sigmoid(
            jnp.dot(pool, m_ref[...], preferred_element_type=jnp.float32)
        )                                                            # (NB, HW)

        o_ref[...] = (x_ca * sa[:, None, :]).astype(o_ref.dtype)

    out_flat = pl.pallas_call(
        kernel,
        out_shape=jax.ShapeDtypeStruct((N, C, HW), x.dtype),
        grid=(N // NB,),
        in_specs=[
            pl.BlockSpec((NB, C, HW), lambda n: (n, 0, 0)),
            pl.BlockSpec((Cs, C), lambda n: (0, 0)),
            pl.BlockSpec((1, Cs), lambda n: (0, 0)),
            pl.BlockSpec((C, Cs), lambda n: (0, 0)),
            pl.BlockSpec((1, C), lambda n: (0, 0)),
            pl.BlockSpec((2 * HW, HW), lambda n: (0, 0)),   # VMEM-resident conv matrix
        ],
        out_specs=pl.BlockSpec((NB, C, HW), lambda n: (n, 0, 0)),
        compiler_params=pltpu.CompilerParams(
            dimension_semantics=("parallel",),
            vmem_limit_bytes=32 * 1024 * 1024,
        ),
    )(x_flat, w1, b1_row, w2, b2_row, m_mat)
    return out_flat.reshape(N, C, H, W)


def cbam_reference(x, w1, b1, w2, b2, w_spatial):
    """Pure-JAX reference matching the PyTorch module semantics."""
    K = w_spatial.shape[-1]
    P = K // 2
    # Channel attention
    scale = jnp.mean(x, axis=(2, 3), keepdims=True)                       # (N,C,1,1)
    s = jnp.einsum('ncij,oc->noij', scale, w1) + b1[None, :, None, None]
    s = s * jax.nn.sigmoid(s)                                             # SiLU
    g = jnp.einsum('nsij,os->noij', s, w2) + b2[None, :, None, None]
    g = jax.nn.sigmoid(g)
    x1 = x * g
    # Spatial attention
    avg_p = jnp.mean(x1, axis=1, keepdims=True)
    max_p = jnp.max(x1, axis=1, keepdims=True)
    pool = jnp.concatenate([avg_p, max_p], axis=1)                        # (N,2,H,W)
    ca = jax.lax.conv_general_dilated(
        pool, w_spatial, window_strides=(1, 1), padding=[(P, P), (P, P)],
        dimension_numbers=('NCHW', 'OIHW', 'NCHW'))
    ca = jax.nn.sigmoid(ca)
    return x1 * ca


if __name__ == "__main__":
    # Module config: input_c = expand_c = 8, reduction 0.25 -> squeeze_c = 2, kernel_size = 7
    N, C, H, W = 2, 8, 16, 16
    Cs = int(C * 0.25)
    K = 7

    key = jax.random.PRNGKey(0)
    kx, k1, kb1, k2, kb2, ks = jax.random.split(key, 6)
    x = jax.random.normal(kx, (N, C, H, W), jnp.float32)
    w1 = 0.2 * jax.random.normal(k1, (Cs, C), jnp.float32)        # conv_reduce weight (1x1)
    b1 = 0.1 * jax.random.normal(kb1, (Cs,), jnp.float32)         # conv_reduce bias
    w2 = 0.2 * jax.random.normal(k2, (C, Cs), jnp.float32)        # conv_expand weight (1x1)
    b2 = 0.1 * jax.random.normal(kb2, (C,), jnp.float32)          # conv_expand bias
    w_sp = 0.1 * jax.random.normal(ks, (1, 2, K, K), jnp.float32) # spatial conv weight, no bias

    out = cbam_attention(x, w1, b1, w2, b2, w_sp)
    out = jax.block_until_ready(out)

    ref = cbam_reference(x, w1, b1, w2, b2, w_sp)
    assert out.shape == (N, C, H, W)
    assert jnp.allclose(out, ref, atol=1e-3, rtol=1e-3), "mismatch vs reference"

    print("KERNEL_OK")
</pallas_src>

<mosaic_0001>
module attributes {stable_mosaic.version = 11 : i64} {
  func.func @kernel(%arg0: i32, %arg1: memref<1x8x256xf32, #tpu.memory_space<vmem>>, %arg2: memref<2x8xf32, #tpu.memory_space<vmem>>, %arg3: memref<1x2xf32, #tpu.memory_space<vmem>>, %arg4: memref<8x2xf32, #tpu.memory_space<vmem>>, %arg5: memref<1x8xf32, #tpu.memory_space<vmem>>, %arg6: memref<512x256xf32, #tpu.memory_space<vmem>>, %arg7: memref<1x8x256xf32, #tpu.memory_space<vmem>>) attributes {dimension_semantics = [#tpu.dimension_semantics<parallel>], iteration_bounds = array<i64: 2>, scalar_prefetch = 0 : i64, scratch_operands = 0 : i64, tpu.core_type = #tpu.core_type<tc>, window_params = [{transform_indices = @transform_0, window_bounds = array<i64: 1, 8, 256>}, {pipeline_mode = #tpu.pipeline_mode<synchronous>, transform_indices = @transform_1, window_bounds = array<i64: 2, 8>}, {pipeline_mode = #tpu.pipeline_mode<synchronous>, transform_indices = @transform_2, window_bounds = array<i64: 1, 2>}, {pipeline_mode = #tpu.pipeline_mode<synchronous>, transform_indices = @transform_3, window_bounds = array<i64: 8, 2>}, {pipeline_mode = #tpu.pipeline_mode<synchronous>, transform_indices = @transform_4, window_bounds = array<i64: 1, 8>}, {pipeline_mode = #tpu.pipeline_mode<synchronous>, transform_indices = @transform_5, window_bounds = array<i64: 512, 256>}, {transform_indices = @transform_6, window_bounds = array<i64: 1, 8, 256>}]} {
    %c0 = arith.constant 0 : index
    %c0_0 = arith.constant 0 : index
    %c0_1 = arith.constant 0 : index
    %0 = vector.load %arg1[%c0, %c0_0, %c0_1] : memref<1x8x256xf32, #tpu.memory_space<vmem>>, vector<1x8x256xf32>
    %cst = arith.constant dense<0.000000e+00> : vector<1x8xf32>
    %1 = vector.multi_reduction <add>, %0, %cst [2] : vector<1x8x256xf32> to vector<1x8xf32>
    %cst_2 = arith.constant 2.560000e+02 : f32
    %2 = vector.broadcast %cst_2 : f32 to vector<1x8xf32>
    %3 = arith.divf %1, %2 : vector<1x8xf32>
    %4 = vector.shape_cast %3 : vector<1x8xf32> to vector<1x1x8xf32>
    %c0_3 = arith.constant 0 : index
    %c0_4 = arith.constant 0 : index
    %5 = vector.load %arg2[%c0_3, %c0_4] : memref<2x8xf32, #tpu.memory_space<vmem>>, vector<2x8xf32>
    %6 = vector.shape_cast %5 : vector<2x8xf32> to vector<1x2x8xf32>
    %7 = vector.broadcast %4 : vector<1x1x8xf32> to vector<1x2x8xf32>
    %8 = arith.mulf %7, %6 : vector<1x2x8xf32>
    %cst_5 = arith.constant dense<0.000000e+00> : vector<1x2xf32>
    %9 = vector.multi_reduction <add>, %8, %cst_5 [2] : vector<1x2x8xf32> to vector<1x2xf32>
    %c0_6 = arith.constant 0 : index
    %c0_7 = arith.constant 0 : index
    %10 = vector.load %arg3[%c0_6, %c0_7] : memref<1x2xf32, #tpu.memory_space<vmem>>, vector<1x2xf32>
    %11 = arith.addf %9, %10 : vector<1x2xf32>
    %12 = arith.negf %11 : vector<1x2xf32>
    %13 = math.exp %12 : vector<1x2xf32>
    %cst_8 = arith.constant 1.000000e+00 : f32
    %14 = vector.broadcast %cst_8 : f32 to vector<1x2xf32>
    %15 = arith.addf %14, %13 : vector<1x2xf32>
    %16 = arith.divf %14, %15 : vector<1x2xf32>
    %17 = arith.mulf %11, %16 : vector<1x2xf32>
    %18 = vector.shape_cast %17 : vector<1x2xf32> to vector<1x1x2xf32>
    %c0_9 = arith.constant 0 : index
    %c0_10 = arith.constant 0 : index
    %19 = vector.load %arg4[%c0_9, %c0_10] : memref<8x2xf32, #tpu.memory_space<vmem>>, vector<8x2xf32>
    %20 = vector.shape_cast %19 : vector<8x2xf32> to vector<1x8x2xf32>
    %21 = vector.broadcast %18 : vector<1x1x2xf32> to vector<1x8x2xf32>
    %22 = arith.mulf %21, %20 : vector<1x8x2xf32>
    %cst_11 = arith.constant dense<0.000000e+00> : vector<1x8xf32>
    %23 = vector.multi_reduction <add>, %22, %cst_11 [2] : vector<1x8x2xf32> to vector<1x8xf32>
    %c0_12 = arith.constant 0 : index
    %c0_13 = arith.constant 0 : index
    %24 = vector.load %arg5[%c0_12, %c0_13] : memref<1x8xf32, #tpu.memory_space<vmem>>, vector<1x8xf32>
    %25 = arith.addf %23, %24 : vector<1x8xf32>
    %26 = arith.negf %25 : vector<1x8xf32>
    %27 = math.exp %26 : vector<1x8xf32>
    %cst_14 = arith.constant 1.000000e+00 : f32
    %28 = vector.broadcast %cst_14 : f32 to vector<1x8xf32>
    %29 = arith.addf %28, %27 : vector<1x8xf32>
    %30 = arith.divf %28, %29 : vector<1x8xf32>
    %31 = vector.shape_cast %30 : vector<1x8xf32> to vector<1x8x1xf32>
    %32 = vector.broadcast %31 : vector<1x8x1xf32> to vector<1x8x256xf32>
    %33 = arith.mulf %0, %32 : vector<1x8x256xf32>
    %cst_15 = arith.constant dense<0.000000e+00> : vector<1x256xf32>
    %34 = vector.multi_reduction <add>, %33, %cst_15 [1] : vector<1x8x256xf32> to vector<1x256xf32>
    %cst_16 = arith.constant 8.000000e+00 : f32
    %35 = vector.broadcast %cst_16 : f32 to vector<1x256xf32>
    %36 = arith.divf %34, %35 : vector<1x256xf32>
    %cst_17 = arith.constant dense<0xFF800000> : vector<1x256xf32>
    %37 = vector.multi_reduction <maximumf>, %33, %cst_17 [1] : vector<1x8x256xf32> to vector<1x256xf32>
    %38 = tpu.concatenate %36, %37 in 1 : vector<1x256xf32>, vector<1x256xf32> -> vector<1x512xf32>
    %c0_18 = arith.constant 0 : index
    %c0_19 = arith.constant 0 : index
    %39 = vector.load %arg6[%c0_18, %c0_19] : memref<512x256xf32, #tpu.memory_space<vmem>>, vector<512x256xf32>
    %cst_20 = arith.constant dense<0.000000e+00> : vector<1x256xf32>
    %40 = tpu.matmul %38, %39, %cst_20 {dimension_numbers = #tpu.dot_dimension_numbers<[1], [0], [0], [1], [0, 0, 1, 1], [], []>} : vector<1x512xf32>, vector<512x256xf32>, vector<1x256xf32> -> vector<1x256xf32>
    %41 = arith.negf %40 : vector<1x256xf32>
    %42 = math.exp %41 : vector<1x256xf32>
    %cst_21 = arith.constant 1.000000e+00 : f32
    %43 = vector.broadcast %cst_21 : f32 to vector<1x256xf32>
    %44 = arith.addf %43, %42 : vector<1x256xf32>
    %45 = arith.divf %43, %44 : vector<1x256xf32>
    %46 = vector.shape_cast %45 : vector<1x256xf32> to vector<1x1x256xf32>
    %47 = vector.broadcast %46 : vector<1x1x256xf32> to vector<1x8x256xf32>
    %48 = arith.mulf %33, %47 : vector<1x8x256xf32>
    %c0_22 = arith.constant 0 : index
    %c0_23 = arith.constant 0 : index
    %c0_24 = arith.constant 0 : index
    %49 = vector.load %arg7[%c0_22, %c0_23, %c0_24] : memref<1x8x256xf32, #tpu.memory_space<vmem>>, vector<1x8x256xf32>
    tpu.vector_store %arg7[%c0_22, %c0_23, %c0_24], %48 {strides = array<i32>} : memref<1x8x256xf32, #tpu.memory_space<vmem>>, vector<1x8x256xf32>,
    return
  }
  func.func @transform_0(%arg0: i32) -> (i32, i32, i32) {
    %c0_i32 = arith.constant 0 : i32
    %c0_i32_0 = arith.constant 0 : i32
    %c0_i32_1 = arith.constant 0 : i32
    return %arg0, %c0_i32, %c0_i32_0 : i32, i32, i32
  }
  func.func @transform_1(%arg0: i32) -> (i32, i32) {
    %c0_i32 = arith.constant 0 : i32
    %c0_i32_0 = arith.constant 0 : i32
    %c0_i32_1 = arith.constant 0 : i32
    return %c0_i32, %c0_i32_0 : i32, i32
  }
  func.func @transform_2(%arg0: i32) -> (i32, i32) {
    %c0_i32 = arith.constant 0 : i32
    %c0_i32_0 = arith.constant 0 : i32
    %c0_i32_1 = arith.constant 0 : i32
    return %c0_i32, %c0_i32_0 : i32, i32
  }
  func.func @transform_3(%arg0: i32) -> (i32, i32) {
    %c0_i32 = arith.constant 0 : i32
    %c0_i32_0 = arith.constant 0 : i32
    %c0_i32_1 = arith.constant 0 : i32
    return %c0_i32, %c0_i32_0 : i32, i32
  }
  func.func @transform_4(%arg0: i32) -> (i32, i32) {
    %c0_i32 = arith.constant 0 : i32
    %c0_i32_0 = arith.constant 0 : i32
    %c0_i32_1 = arith.constant 0 : i32
    return %c0_i32, %c0_i32_0 : i32, i32
  }
  func.func @transform_5(%arg0: i32) -> (i32, i32) {
    %c0_i32 = arith.constant 0 : i32
    %c0_i32_0 = arith.constant 0 : i32
    %c0_i32_1 = arith.constant 0 : i32
    return %c0_i32, %c0_i32_0 : i32, i32
  }
  func.func @transform_6(%arg0: i32) -> (i32, i32, i32) {
    %c0_i32 = arith.constant 0 : i32
    %c0_i32_0 = arith.constant 0 : i32
    %c0_i32_1 = arith.constant 0 : i32
    return %arg0, %c0_i32, %c0_i32_0 : i32, i32, i32
  }
}

</mosaic_0001>

<llo_original>
// kernel: tpu_custom_call.1
$region0: #{tpu_custom_call.1}
  #allocation0 [shape = 'u32[]', space=smem, size = 0x4, offset = 0x4, fixed_abs, tag = 'smem constant byte address 0x4 - core index']
  #allocation1 [shape = 'u32[144,128]{1,0:T(1,128)}', space=vmem, size = 0x12000, scoped, tag = 'internal scratch']
  %s0 = inlined_call_operand.hbm [shape: f32[2,8,256], index: 0, kind: input, shape index: {}]
  %s1 = inlined_call_operand.vmem [shape: f32[2,8], index: 1, kind: input, shape index: {}]
  %s2 = inlined_call_operand.vmem [shape: f32[1,2], index: 2, kind: input, shape index: {}]
  %s3 = inlined_call_operand.vmem [shape: f32[8,2], index: 3, kind: input, shape index: {}]
  %s4 = inlined_call_operand.vmem [shape: f32[1,8], index: 4, kind: input, shape index: {}]
  %s5 = inlined_call_operand.hbm [shape: f32[512,256], index: 5, kind: input, shape index: {}]
  %s6 = inlined_call_operand.hbm [shape: f32[2,8,256], index: 6, kind: output, shape index: {}]
  %s7 = sld [smem:[#allocation0]]
  $region65: #{tpu_custom_call.1} parent=0
    _
  %s9 = ssub.s32 1, %s7
  %s10 = scalar_select 0, %s9, %s7
  $region1: #{tpu_custom_call.1} parent=0
    #allocation2 [shape = 'u8[16384]{0}', space=vmem, size = 0x4000, scoped, tag = 'input window, operand 0']
    #allocation3 [shape = 's32[2]{0}', space=sflag, size = 0x8, scoped, tag = 'scoped memory for tpu_custom_call.1']
    #allocation4 [shape = 's32[2]{0}', space=sflag, size = 0x8, scoped, tag = 'scoped memory for tpu_custom_call.1']
    #allocation5 [shape = 'u8[524288]{0}', space=vmem, size = 0x80000, scoped, tag = 'input window, operand 5, single buffered']
    #allocation6 [shape = 's32[1]{0}', space=sflag, size = 0x4, scoped, tag = 'scoped memory for tpu_custom_call.1']
    #allocation7 [shape = 'u8[16384]{0}', space=vmem, size = 0x4000, scoped, tag = 'output window, operand 0']
    %11 = vsyncpa [#allocation3], 0
    %s12 = scalar_lea.sflag [#allocation3], 1
    %13 = vsyncpa %s12, 0
    %14 = vsyncpa [#allocation6], 0
    %15 = vsyncpa [#allocation4], 0
    %s16 = scalar_lea.sflag [#allocation4], 1
    %17 = vsyncpa %s16, 0
    loop: start=0, step=1, limit=4
    $region2: #{tpu_custom_call.1} parent=1 // loop_pre_header
      _
    $region3: #{tpu_custom_call.1} parent=1 // loop_header
      %s19 = sphi 0, %s23
      %p20 = scmp.ge.s32.totalorder %s19, 4
      %s29 = sphi 0, %s31
      %s32 = sphi 0, %s29
      %s33 = sphi 0, %s32
      %s49 = sphi 0, %s33
      %s53 = sphi 0, %s53
      %s55 = sphi 0, %s53
      %s56 = sphi 0, %s55
      %s70 = sphi 0, %s56
      %s74 = sphi 0, %s74
      %s76 = sphi 0, %s74
      %s77 = sphi 0, %s76
      %s91 = sphi 0, %s77
      %s95 = sphi 0, %s95
      %s97 = sphi 0, %s95
      %s98 = sphi 0, %s97
      %s112 = sphi 0, %s98
      %s116 = sphi 0, %s116
      %s118 = sphi 0, %s116
      %s119 = sphi 0, %s118
      %s133 = sphi 0, %s119
      %s137 = sphi 0, %s137
      %s139 = sphi 0, %s137
      %s140 = sphi 0, %s139
      %s154 = sphi 0, %s140
      %s160 = sphi 0, %s162
      %s163 = sphi 0, %s160
      %s164 = sphi 0, %s163
      %s180 = sphi 0, %s164
    $region4: #{tpu_custom_call.1} parent=1 // loop_header_branch
      %22 = sbr.rel (%p20) target = $region8
    $region5: #{tpu_custom_call.1} parent=1 // loop_body
      %s24 = ssub.s32 %s19, 1
      %s25 = ssub.s32 %s19, 2
      %s26 = sadd.s32 %s19, 1
      %s27 = ssub.s32 %s19, %s26
      %p28 = scmp.eq.s32.totalorder %s27, 0
      %s30 = sadd.s32 %s29, 1
      %s31 = scalar_select %p28, %s29, %s30
      %p34 = pneg %p28
      %p35 = scmp.eq.s32.totalorder %s19, 1
      %p36 = por %p34, %p35
      %p37 = scmp.ne.s32.totalorder %s29, %s32
      %p38 = scmp.eq.s32.totalorder %s19, 0
      %p39 = por %p37, %p38
      %p40 = scmp.ne.s32.totalorder %s29, %s32
      %p41 = scmp.eq.s32.totalorder %s24, 1
      %p42 = por %p40, %p41
      %p43 = scmp.ne.s32.totalorder %s32, %s33
      %p44 = scmp.eq.s32.totalorder %s24, 0
      %p45 = por %p43, %p44
      %p46 = scmp.ne.s32.totalorder %s32, %s33
      %p47 = scmp.eq.s32.totalorder %s25, 1
      %p48 = por %p46, %p47
      %p50 = scmp.ne.s32.totalorder %s33, %s49
      %p51 = scmp.eq.s32.totalorder %s25, 0
      %p52 = por %p50, %p51
      %s54 = sadd.s32 %s53, 1
      %p57 = scmp.eq.s32.totalorder %s19, 1
      %p58 = scmp.ne.s32.totalorder %s53, %s55
      %p59 = scmp.eq.s32.totalorder %s19, 0
      %p60 = por %p58, %p59
      %p61 = scmp.ne.s32.totalorder %s53, %s55
      %p62 = scmp.eq.s32.totalorder %s24, 1
      %p63 = por %p61, %p62
      %p64 = scmp.ne.s32.totalorder %s55, %s56
      %p65 = scmp.eq.s32.totalorder %s24, 0
      %p66 = por %p64, %p65
      %p67 = scmp.ne.s32.totalorder %s55, %s56
      %p68 = scmp.eq.s32.totalorder %s25, 1
      %p69 = por %p67, %p68
      %p71 = scmp.ne.s32.totalorder %s56, %s70
      %p72 = scmp.eq.s32.totalorder %s25, 0
      %p73 = por %p71, %p72
      %s75 = sadd.s32 %s74, 1
      %p78 = scmp.eq.s32.totalorder %s19, 1
      %p79 = scmp.ne.s32.totalorder %s74, %s76
      %p80 = scmp.eq.s32.totalorder %s19, 0
      %p81 = por %p79, %p80
      %p82 = scmp.ne.s32.totalorder %s74, %s76
      %p83 = scmp.eq.s32.totalorder %s24, 1
      %p84 = por %p82, %p83
      %p85 = scmp.ne.s32.totalorder %s76, %s77
      %p86 = scmp.eq.s32.totalorder %s24, 0
      %p87 = por %p85, %p86
      %p88 = scmp.ne.s32.totalorder %s76, %s77
      %p89 = scmp.eq.s32.totalorder %s25, 1
      %p90 = por %p88, %p89
      %p92 = scmp.ne.s32.totalorder %s77, %s91
      %p93 = scmp.eq.s32.totalorder %s25, 0
      %p94 = por %p92, %p93
      %s96 = sadd.s32 %s95, 1
      %p99 = scmp.eq.s32.totalorder %s19, 1
      %p100 = scmp.ne.s32.totalorder %s95, %s97
      %p101 = scmp.eq.s32.totalorder %s19, 0
      %p102 = por %p100, %p101
      %p103 = scmp.ne.s32.totalorder %s95, %s97
      %p104 = scmp.eq.s32.totalorder %s24, 1
      %p105 = por %p103, %p104
      %p106 = scmp.ne.s32.totalorder %s97, %s98
      %p107 = scmp.eq.s32.totalorder %s24, 0
      %p108 = por %p106, %p107
      %p109 = scmp.ne.s32.totalorder %s97, %s98
      %p110 = scmp.eq.s32.totalorder %s25, 1
      %p111 = por %p109, %p110
      %p113 = scmp.ne.s32.totalorder %s98, %s112
      %p114 = scmp.eq.s32.totalorder %s25, 0
      %p115 = por %p113, %p114
      %s117 = sadd.s32 %s116, 1
      %p120 = scmp.eq.s32.totalorder %s19, 1
      %p121 = scmp.ne.s32.totalorder %s116, %s118
      %p122 = scmp.eq.s32.totalorder %s19, 0
      %p123 = por %p121, %p122
      %p124 = scmp.ne.s32.totalorder %s116, %s118
      %p125 = scmp.eq.s32.totalorder %s24, 1
      %p126 = por %p124, %p125
      %p127 = scmp.ne.s32.totalorder %s118, %s119
      %p128 = scmp.eq.s32.totalorder %s24, 0
      %p129 = por %p127, %p128
      %p130 = scmp.ne.s32.totalorder %s118, %s119
      %p131 = scmp.eq.s32.totalorder %s25, 1
      %p132 = por %p130, %p131
      %p134 = scmp.ne.s32.totalorder %s119, %s133
      %p135 = scmp.eq.s32.totalorder %s25, 0
      %p136 = por %p134, %p135
      %s138 = sadd.s32 %s137, 1
      %p141 = scmp.eq.s32.totalorder %s19, 1
      %p142 = scmp.ne.s32.totalorder %s137, %s139
      %p143 = scmp.eq.s32.totalorder %s19, 0
      %p144 = por %p142, %p143
      %p145 = scmp.ne.s32.totalorder %s137, %s139
      %p146 = scmp.eq.s32.totalorder %s24, 1
      %p147 = por %p145, %p146
      %p148 = scmp.ne.s32.totalorder %s139, %s140
      %p149 = scmp.eq.s32.totalorder %s24, 0
      %p150 = por %p148, %p149
      %p151 = scmp.ne.s32.totalorder %s139, %s140
      %p152 = scmp.eq.s32.totalorder %s25, 1
      %p153 = por %p151, %p152
      %p155 = scmp.ne.s32.totalorder %s140, %s154
      %p156 = scmp.eq.s32.totalorder %s25, 0
      %p157 = por %p155, %p156
      %s158 = ssub.s32 %s19, %s26
      %p159 = scmp.eq.s32.totalorder %s158, 0
      %s161 = sadd.s32 %s160, 1
      %s162 = scalar_select %p159, %s160, %s161
      %p165 = pneg %p159
      %p166 = scmp.eq.s32.totalorder %s19, 1
      %p167 = por %p165, %p166
      %p168 = scmp.ne.s32.totalorder %s160, %s163
      %p169 = scmp.eq.s32.totalorder %s19, 0
      %p170 = por %p168, %p169
      %p171 = scmp.ne.s32.totalorder %s160, %s163
      %p172 = scmp.eq.s32.totalorder %s24, 1
      %p173 = por %p171, %p172
      %p174 = scmp.ne.s32.totalorder %s163, %s164
      %p175 = scmp.eq.s32.totalorder %s24, 0
      %p176 = por %p174, %p175
      %p177 = scmp.ne.s32.totalorder %s163, %s164
      %p178 = scmp.eq.s32.totalorder %s25, 1
      %p179 = por %p177, %p178
      %p181 = scmp.ne.s32.totalorder %s164, %s180
      %p182 = scmp.eq.s32.totalorder %s25, 0
      %p183 = por %p181, %p182
      %p184 = scmp.le.s32.totalorder 1, %s19
      %p185 = scmp.lt.s32.totalorder %s19, 3
      %p186 = pnand %p184, %p185
      %p187 = pneg %p186
      // Predicated region
      $region9: #{tpu_custom_call.1} parent=5 // pred_check
        _
      $region10: #{tpu_custom_call.1} parent=5 // pred_check_branch
        %189 = sbr.rel (%p186) target = $region12
      $region11: #{tpu_custom_call.1} parent=5 // pred_region
        %s190 = ssub.s32 %s19, 1
        // Predicated region
        $region13: #{tpu_custom_call.1} parent=11 // pred_check
          %p191 = pneg %p66
        $region14: #{tpu_custom_call.1} parent=11 // pred_check_branch
          %193 = sbr.rel (%p191) target = $region16
        $region15: #{tpu_custom_call.1} parent=11 // pred_region
          _
        $region16: #{tpu_custom_call.1} parent=11 // pred_fallthru
          _
        // Predicated region
        $region17: #{tpu_custom_call.1} parent=11 // pred_check
          %p194 = pneg %p87
        $region18: #{tpu_custom_call.1} parent=11 // pred_check_branch
          %196 = sbr.rel (%p194) target = $region20
        $region19: #{tpu_custom_call.1} parent=11 // pred_region
          _
        $region20: #{tpu_custom_call.1} parent=11 // pred_fallthru
          _
        // Predicated region
        $region21: #{tpu_custom_call.1} parent=11 // pred_check
          %p197 = pneg %p108
        $region22: #{tpu_custom_call.1} parent=11 // pred_check_branch
          %199 = sbr.rel (%p197) target = $region24
        $region23: #{tpu_custom_call.1} parent=11 // pred_region
          _
        $region24: #{tpu_custom_call.1} parent=11 // pred_fallthru
          _
        // Predicated region
        $region25: #{tpu_custom_call.1} parent=11 // pred_check
          %p200 = pneg %p129
        $region26: #{tpu_custom_call.1} parent=11 // pred_check_branch
          %202 = sbr.rel (%p200) target = $region28
        $region27: #{tpu_custom_call.1} parent=11 // pred_region
          _
        $region28: #{tpu_custom_call.1} parent=11 // pred_fallthru
          _
        // Predicated region
        $region29: #{tpu_custom_call.1} parent=11 // pred_check
          %p203 = pneg %p150
        $region30: #{tpu_custom_call.1} parent=11 // pred_check_branch
          %205 = sbr.rel (%p203) target = $region32
        $region31: #{tpu_custom_call.1} parent=11 // pred_region
          %s207 = ssub.s32 16384, 16384
          %208 = vsyncadd [#allocation6], %s207
          %s209 = sshll.u32 [#allocation5], 4
          %s210 = int_to_ptr.vmem [resolvable:$true] %s209
          %215 = dma.hbm_to_vmem [thread:$0]  %s5, 16384, %s210, [#allocation6], 256, 256, 16
        $region32: #{tpu_custom_call.1} parent=11 // pred_fallthru
          _
      $region12: #{tpu_custom_call.1} parent=5 // pred_fallthru
        _
      %p216 = scmp.lt.s32.totalorder %s19, 2
      // Predicated region
      $region33: #{tpu_custom_call.1} parent=5 // pred_check
        %p217 = pneg %p216
      $region34: #{tpu_custom_call.1} parent=5 // pred_check_branch
        %219 = sbr.rel (%p217) target = $region36
      $region35: #{tpu_custom_call.1} parent=5 // pred_region
        // Predicated region
        $region37: #{tpu_custom_call.1} parent=35 // pred_check
          %p220 = pneg %p39
        $region38: #{tpu_custom_call.1} parent=35 // pred_check_branch
          %222 = sbr.rel (%p220) target = $region40
        $region39: #{tpu_custom_call.1} parent=35 // pred_region
          %s223 = sand.u32 %s29, 1
          %s224 = scalar_lea.sflag [#allocation3], %s223
          %s225 = sand.u32 %s29, 1
          %s226 = smul.addr %s225, 16
          %s227 = scalar_lea.vmem [#allocation2], %s226
          %s229 = ssub.s32 256, 256
          %230 = vsyncadd %s224, %s229
          %s231 = smul.addr %s19, 2
          %s232 = smul.addr %s231, 128
          %s233 = scalar_lea.hbm %s0, %s232
          %s235 = sshll.u32 %s227, 4
          %s236 = int_to_ptr.vmem [resolvable:$true] %s235
          %238 = dma.hbm_to_vmem [thread:$0]  %s233, 256, %s236, %s224
        $region40: #{tpu_custom_call.1} parent=35 // pred_fallthru
          _
      $region36: #{tpu_custom_call.1} parent=5 // pred_fallthru
        _
      %p239 = scmp.le.s32.totalorder 1, %s19
      %p240 = scmp.lt.s32.totalorder %s19, 3
      %p241 = pnand %p239, %p240
      %p242 = pneg %p241
      // Predicated region
      $region41: #{tpu_custom_call.1} parent=5 // pred_check
        _
      $region42: #{tpu_custom_call.1} parent=5 // pred_check_branch
        %244 = sbr.rel (%p241) target = $region44
      $region43: #{tpu_custom_call.1} parent=5 // pred_region
        %s245 = ssub.s32 %s19, 1
        %s246 = sand.u32 %s32, 1
        %s247 = scalar_lea.sflag [#allocation3], %s246
        %s248 = sand.u32 %s32, 1
        %s249 = smul.addr %s248, 16
        %s250 = scalar_lea.vmem [#allocation2], %s249
        // Predicated region
        $region45: #{tpu_custom_call.1} parent=43 // pred_check
          %p251 = pneg %p45
        $region46: #{tpu_custom_call.1} parent=43 // pred_check_branch
          %253 = sbr.rel (%p251) target = $region48
        $region47: #{tpu_custom_call.1} parent=43 // pred_region
          %254 = dma.done %s247, 256
        $region48: #{tpu_custom_call.1} parent=43 // pred_fallthru
          _
        // Predicated region
        $region49: #{tpu_custom_call.1} parent=43 // pred_check
          %p255 = pneg %p150
        $region50: #{tpu_custom_call.1} parent=43 // pred_check_branch
          %257 = sbr.rel (%p255) target = $region52
        $region51: #{tpu_custom_call.1} parent=43 // pred_region
          %258 = dma.done [#allocation6], 16384
        $region52: #{tpu_custom_call.1} parent=43 // pred_fallthru
          _
        %s259 = sand.u32 %s32, 1
        %s260 = scalar_lea.sflag [#allocation3], %s259
        %s261 = sand.u32 %s32, 1
        %s262 = smul.addr %s261, 16
        %s263 = scalar_lea.vmem [#allocation2], %s262
        %p264 = pneg %p45
        %p265 = pneg %p42
        %p266 = pneg %p66
        %p267 = pneg %p63
        %p268 = pneg %p87
        %p269 = pneg %p84
        %p270 = pneg %p108
        %p271 = pneg %p105
        %p272 = pneg %p129
        %p273 = pneg %p126
        %p274 = pneg %p150
        %p275 = pneg %p147
        %p276 = pneg %p176
        %p277 = pneg %p173
        %s278 = sand.u32 %s163, 1
        %s279 = scalar_lea.sflag [#allocation4], %s278
        %s280 = sand.u32 %s163, 1
        %s281 = smul.addr %s280, 16
        %s282 = scalar_lea.vmem [#allocation7], %s281
        %v283 = vld [vmem:[%s250] sm:$0xff]
        %v284 = vld [vmem:[%s250 + $0x8] sm:$0xff]
        %v285 = vadd.f32 %v283, %v284
        %286 = vadd.xlane.f32.xlu0 %v285
        %v287 = vpop.xlane.xlu0 %286
        %v288 = vrcp.pop 256.0
        %v289 = vmul.f32 %v287, %v288
        %v290 = vld [vmem:[%s1] sm:$0x3]
        %v292 = vlaneseq
        %v293 = vshrl.u32 %v292, 7
        %v294 = vsub.s32 0, %v293
        %v295 = vrot.slane %v290, %v294
        %297 = vbcast.lane.b32.xlu0 %v295, 256
        %v298 = vpop.permute.xlu0 %297
        %v299 = vlaneseq
        %v300 = vshrl.u32 %v299, 7
        %v301 = vsub.s32 1, %v300
        %v302 = vrot.slane %v290, %v301
        %304 = vbcast.lane.b32.xlu0 %v302, 256
        %v305 = vpop.permute.xlu0 %304
        %v308 = vmul.f32 %v289, %v298
        %v309 = vmul.f32 %v289, %v305
        %312 = vset.pattern.permute.xlu0 0
        %313 = vperm.xlu0 %312, %v308
        %v314 = vpop.permute.xlu0 %313
        %315 = vset.pattern.permute.xlu0 0
        %316 = vperm.xlu0 %315, %v309
        %v317 = vpop.permute.xlu0 %316
        %v318 = vlaneseq
        %v319 = vand.u32 %v318, 127
        %v320 = vlaneseq
        %v321 = vshrl.u32 %v320, 7
        %v322 = vsub.s32 %v319, %v321
        %v323 = vrot.slane %v314, %v322
        %v324 = vlaneseq
        %v325 = vshrl.u32 %v324, 7
        %v326 = vsub.s32 %v319, %v325
        %v327 = vrot.slane %v317, %v326
        %vm328 = vcmask 1041409
        %v329 = vsel %vm328, %v327, %v323
        %vm331 = vcmask 58368
        %v332 = vsel %vm331, %v329, 0.0
        %333 = vadd.xlane.f32.xlu0 %v332
        %v334 = vpop.xlane.xlu0 %333
        %v335 = vld [vmem:[%s2] sm:$0x1]
        %v337 = vlaneseq
        %v338 = vshrl.u32 %v337, 7
        %v339 = vsub.s32 0, %v338
        %v340 = vrot.slane %v335, %v339
        %342 = vbcast.lane.b32.xlu0 %v340, 256
        %v343 = vpop.permute.xlu0 %342
        %v345 = vadd.f32 %v334, %v343
        %v346 = vxor.u32 %v345, 2147483648
        %v347 = vmul.f32 %v346, 1.442695
        %v348 = vpow.pop %v347
        %v349 = vadd.f32 %v348, 1.0
        %v350 = vrcp.pop %v349
        %v351 = vmul.f32 1.0, %v350
        %v352 = vmul.f32 %v345, %v351
        %v353 = vld [vmem:[%s3] sm:$0xff]
        %v355 = vlaneseq
        %v356 = vshrl.u32 %v355, 7
        %v357 = vsub.s32 0, %v356
        %v358 = vrot.slane %v353, %v357
        %360 = vbcast.lane.b32.xlu0 %v358, 256
        %v361 = vpop.permute.xlu0 %360
        %v362 = vlaneseq
        %v363 = vshrl.u32 %v362, 7
        %v364 = vsub.s32 1, %v363
        %v365 = vrot.slane %v353, %v364
        %367 = vbcast.lane.b32.xlu0 %v365, 256
        %v368 = vpop.permute.xlu0 %367
        %v369 = vlaneseq
        %v370 = vshrl.u32 %v369, 7
        %v371 = vsub.s32 2, %v370
        %v372 = vrot.slane %v353, %v371
        %374 = vbcast.lane.b32.xlu0 %v372, 256
        %v375 = vpop.permute.xlu0 %374
        %v376 = vlaneseq
        %v377 = vshrl.u32 %v376, 7
        %v378 = vsub.s32 3, %v377
        %v379 = vrot.slane %v353, %v378
        %381 = vbcast.lane.b32.xlu0 %v379, 256
        %v382 = vpop.permute.xlu0 %381
        %v383 = vlaneseq
        %v384 = vshrl.u32 %v383, 7
        %v385 = vsub.s32 4, %v384
        %v386 = vrot.slane %v353, %v385
        %388 = vbcast.lane.b32.xlu0 %v386, 256
        %v389 = vpop.permute.xlu0 %388
        %v390 = vlaneseq
        %v391 = vshrl.u32 %v390, 7
        %v392 = vsub.s32 5, %v391
        %v393 = vrot.slane %v353, %v392
        %395 = vbcast.lane.b32.xlu0 %v393, 256
        %v396 = vpop.permute.xlu0 %395
        %v397 = vlaneseq
        %v398 = vshrl.u32 %v397, 7
        %v399 = vsub.s32 6, %v398
        %v400 = vrot.slane %v353, %v399
        %402 = vbcast.lane.b32.xlu0 %v400, 256
        %v403 = vpop.permute.xlu0 %402
        %v404 = vlaneseq
        %v405 = vshrl.u32 %v404, 7
        %v406 = vsub.s32 7, %v405
        %v407 = vrot.slane %v353, %v406
        %409 = vbcast.lane.b32.xlu0 %v407, 256
        %v410 = vpop.permute.xlu0 %409
        %v419 = vmul.f32 %v352, %v361
        %v420 = vmul.f32 %v352, %v368
        %v421 = vmul.f32 %v352, %v375
        %v422 = vmul.f32 %v352, %v382
        %v423 = vmul.f32 %v352, %v389
        %v424 = vmul.f32 %v352, %v396
        %v425 = vmul.f32 %v352, %v403
        %v426 = vmul.f32 %v352, %v410
        %435 = vset.pattern.permute.xlu0 0
        %436 = vperm.xlu0 %435, %v419
        %v437 = vpop.permute.xlu0 %436
        %438 = vset.pattern.permute.xlu0 0
        %439 = vperm.xlu0 %438, %v420
        %v440 = vpop.permute.xlu0 %439
        %441 = vset.pattern.permute.xlu0 0
        %442 = vperm.xlu0 %441, %v421
        %v443 = vpop.permute.xlu0 %442
        %444 = vset.pattern.permute.xlu0 0
        %445 = vperm.xlu0 %444, %v422
        %v446 = vpop.permute.xlu0 %445
        %447 = vset.pattern.permute.xlu0 0
        %448 = vperm.xlu0 %447, %v423
        %v449 = vpop.permute.xlu0 %448
        %450 = vset.pattern.permute.xlu0 0
        %451 = vperm.xlu0 %450, %v424
        %v452 = vpop.permute.xlu0 %451
        %453 = vset.pattern.permute.xlu0 0
        %454 = vperm.xlu0 %453, %v425
        %v455 = vpop.permute.xlu0 %454
        %456 = vset.pattern.permute.xlu0 0
        %457 = vperm.xlu0 %456, %v426
        %v458 = vpop.permute.xlu0 %457
        %v459 = vlaneseq
        %v460 = vshrl.u32 %v459, 7
        %v461 = vsub.s32 %v319, %v460
        %v462 = vrot.slane %v437, %v461
        %v463 = vlaneseq
        %v464 = vshrl.u32 %v463, 7
        %v465 = vsub.s32 %v319, %v464
        %v466 = vrot.slane %v440, %v465
        %v467 = vlaneseq
        %v468 = vshrl.u32 %v467, 7
        %v469 = vsub.s32 %v319, %v468
        %v470 = vrot.slane %v443, %v469
        %v471 = vlaneseq
        %v472 = vshrl.u32 %v471, 7
        %v473 = vsub.s32 %v319, %v472
        %v474 = vrot.slane %v446, %v473
        %v475 = vlaneseq
        %v476 = vshrl.u32 %v475, 7
        %v477 = vsub.s32 %v319, %v476
        %v478 = vrot.slane %v449, %v477
        %v479 = vlaneseq
        %v480 = vshrl.u32 %v479, 7
        %v481 = vsub.s32 %v319, %v480
        %v482 = vrot.slane %v452, %v481
        %v483 = vlaneseq
        %v484 = vshrl.u32 %v483, 7
        %v485 = vsub.s32 %v319, %v484
        %v486 = vrot.slane %v455, %v485
        %v487 = vlaneseq
        %v488 = vshrl.u32 %v487, 7
        %v489 = vsub.s32 %v319, %v488
        %v490 = vrot.slane %v458, %v489
        %v491 = vsel %vm328, %v466, %v462
        %vm492 = vcmask 1042434
        %v493 = vsel %vm492, %v470, %v491
        %vm494 = vcmask 1043459
        %v495 = vsel %vm494, %v474, %v493
        %vm496 = vcmask 1044484
        %v497 = vsel %vm496, %v478, %v495
        %vm498 = vcmask 1045509
        %v499 = vsel %vm498, %v482, %v497
        %vm500 = vcmask 1046534
        %v501 = vsel %vm500, %v486, %v499
        %vm502 = vcmask 1047559
        %v503 = vsel %vm502, %v490, %v501
        %vm505 = vcmask 15360
        %v506 = vsel %vm505, %v503, 0.0
        %507 = vadd.xlane.f32.xlu0 %v506
        %v508 = vpop.xlane.xlu0 %507
        %v509 = vld [vmem:[%s4] sm:$0x1]
        %v511 = vlaneseq
        %v512 = vshrl.u32 %v511, 7
        %v513 = vsub.s32 0, %v512
        %v514 = vrot.slane %v509, %v513
        %516 = vbcast.lane.b32.xlu0 %v514, 256
        %v517 = vpop.permute.xlu0 %516
        %v519 = vadd.f32 %v508, %v517
        %v520 = vxor.u32 %v519, 2147483648
        %v521 = vmul.f32 %v520, 1.442695
        %v522 = vpow.pop %v521
        %v523 = vadd.f32 %v522, 1.0
        %v524 = vrcp.pop %v523
        %v525 = vmul.f32 1.0, %v524
        %527 = vset.pattern.permute.xlu0 0
        %528 = vperm.xlu0 %527, %v525
        %v529 = vpop.permute.xlu0 %528
        %v531 = vmul.f32 %v283, %v529
        %v532 = vmul.f32 %v284, %v529
        %v533 = vrot.slane %v531, 4
        %v534 = vadd.f32 %v531, %v533
        %v535 = vrot.slane %v534, 2
        %v536 = vadd.f32 %v534, %v535
        %v537 = vrot.slane %v536, 1
        %v538 = vadd.f32 %v536, %v537
        %v539 = vrot.slane %v532, 4
        %v540 = vadd.f32 %v532, %v539
        %v541 = vrot.slane %v540, 2
        %v542 = vadd.f32 %v540, %v541
        %v543 = vrot.slane %v542, 1
        %v544 = vadd.f32 %v542, %v543
        %v545 = vrcp.pop 8.0
        %v546 = vmul.f32 %v538, %v545
        %v547 = vmul.f32 %v544, %v545
        %v548 = vrot.slane %v531, 4
        %v549 = vmax.f32 %v531, %v548
        %v550 = vrot.slane %v549, 2
        %v551 = vmax.f32 %v549, %v550
        %v552 = vrot.slane %v551, 1
        %v553 = vmax.f32 %v551, %v552
        %v554 = vrot.slane %v532, 4
        %v555 = vmax.f32 %v532, %v554
        %v556 = vrot.slane %v555, 2
        %v557 = vmax.f32 %v555, %v556
        %v558 = vrot.slane %v557, 1
        %v559 = vmax.f32 %v557, %v558
        %v560 = vld [vmem:[#allocation5] sm:$0xff]
        %v561 = vld [vmem:[#allocation5 + $0x8] sm:$0xff]
        %v562 = vld [vmem:[#allocation5 + $0x10] sm:$0xff]
        %v563 = vld [vmem:[#allocation5 + $0x18] sm:$0xff]
        %v564 = vld [vmem:[#allocation5 + $0x20] sm:$0xff]
        %v565 = vld [vmem:[#allocation5 + $0x28] sm:$0xff]
        %v566 = vld [vmem:[#allocation5 + $0x30] sm:$0xff]
        %v567 = vld [vmem:[#allocation5 + $0x38] sm:$0xff]
        %v568 = vld [vmem:[#allocation5 + $0x40] sm:$0xff]
        %v569 = vld [vmem:[#allocation5 + $0x48] sm:$0xff]
        %v570 = vld [vmem:[#allocation5 + $0x50] sm:$0xff]
        %v571 = vld [vmem:[#allocation5 + $0x58] sm:$0xff]
        %v572 = vld [vmem:[#allocation5 + $0x60] sm:$0xff]
        %v573 = vld [vmem:[#allocation5 + $0x68] sm:$0xff]
        %v574 = vld [vmem:[#allocation5 + $0x70] sm:$0xff]
        %v575 = vld [vmem:[#allocation5 + $0x78] sm:$0xff]
        %v576 = vld [vmem:[#allocation5 + $0x80] sm:$0xff]
        %v577 = vld [vmem:[#allocation5 + $0x88] sm:$0xff]
        %v578 = vld [vmem:[#allocation5 + $0x90] sm:$0xff]
        %v579 = vld [vmem:[#allocation5 + $0x98] sm:$0xff]
        %v580 = vld [vmem:[#allocation5 + $0xa0] sm:$0xff]
        %v581 = vld [vmem:[#allocation5 + $0xa8] sm:$0xff]
        %v582 = vld [vmem:[#allocation5 + $0xb0] sm:$0xff]
        %v583 = vld [vmem:[#allocation5 + $0xb8] sm:$0xff]
        %v584 = vld [vmem:[#allocation5 + $0xc0] sm:$0xff]
        %v585 = vld [vmem:[#allocation5 + $0xc8] sm:$0xff]
        %v586 = vld [vmem:[#allocation5 + $0xd0] sm:$0xff]
        %v587 = vld [vmem:[#allocation5 + $0xd8] sm:$0xff]
        %v588 = vld [vmem:[#allocation5 + $0xe0] sm:$0xff]
        %v589 = vld [vmem:[#allocation5 + $0xe8] sm:$0xff]
        %v590 = vld [vmem:[#allocation5 + $0xf0] sm:$0xff]
        %v591 = vld [vmem:[#allocation5 + $0xf8] sm:$0xff]
        %v592 = vld [vmem:[#allocation5 + $0x100] sm:$0xff]
        %v593 = vld [vmem:[#allocation5 + $0x108] sm:$0xff]
        %v594 = vld [vmem:[#allocation5 + $0x110] sm:$0xff]
        %v595 = vld [vmem:[#allocation5 + $0x118] sm:$0xff]
        %v596 = vld [vmem:[#allocation5 + $0x120] sm:$0xff]
        %v597 = vld [vmem:[#allocation5 + $0x128] sm:$0xff]
        %v598 = vld [vmem:[#allocation5 + $0x130] sm:$0xff]
        %v599 = vld [vmem:[#allocation5 + $0x138] sm:$0xff]
        %v600 = vld [vmem:[#allocation5 + $0x140] sm:$0xff]
        %v601 = vld [vmem:[#allocation5 + $0x148] sm:$0xff]
        %v602 = vld [vmem:[#allocation5 + $0x150] sm:$0xff]
        %v603 = vld [vmem:[#allocation5 + $0x158] sm:$0xff]
        %v604 = vld [vmem:[#allocation5 + $0x160] sm:$0xff]
        %v605 = vld [vmem:[#allocation5 + $0x168] sm:$0xff]
        %v606 = vld [vmem:[#allocation5 + $0x170] sm:$0xff]
        %v607 = vld [vmem:[#allocation5 + $0x178] sm:$0xff]
        %v608 = vld [vmem:[#allocation5 + $0x180] sm:$0xff]
        %v609 = vld [vmem:[#allocation5 + $0x188] sm:$0xff]
        %v610 = vld [vmem:[#allocation5 + $0x190] sm:$0xff]
        %v611 = vld [vmem:[#allocation5 + $0x198] sm:$0xff]
        %v612 = vld [vmem:[#allocation5 + $0x1a0] sm:$0xff]
        %v613 = vld [vmem:[#allocation5 + $0x1a8] sm:$0xff]
        %v614 = vld [vmem:[#allocation5 + $0x1b0] sm:$0xff]
        %v615 = vld [vmem:[#allocation5 + $0x1b8] sm:$0xff]
        %v616 = vld [vmem:[#allocation5 + $0x1c0] sm:$0xff]
        %v617 = vld [vmem:[#allocation5 + $0x1c8] sm:$0xff]
        %v618 = vld [vmem:[#allocation5 + $0x1d0] sm:$0xff]
        %v619 = vld [vmem:[#allocation5 + $0x1d8] sm:$0xff]
        %v620 = vld [vmem:[#allocation5 + $0x1e0] sm:$0xff]
        %v621 = vld [vmem:[#allocation5 + $0x1e8] sm:$0xff]
        %v622 = vld [vmem:[#allocation5 + $0x1f0] sm:$0xff]
        %v623 = vld [vmem:[#allocation5 + $0x1f8] sm:$0xff]
        %v624 = vld [vmem:[#allocation5 + $0x200] sm:$0xff]
        %v625 = vld [vmem:[#allocation5 + $0x208] sm:$0xff]
        %v626 = vld [vmem:[#allocation5 + $0x210] sm:$0xff]
        %v627 = vld [vmem:[#allocation5 + $0x218] sm:$0xff]
        %v628 = vld [vmem:[#allocation5 + $0x220] sm:$0xff]
        %v629 = vld [vmem:[#allocation5 + $0x228] sm:$0xff]
        %v630 = vld [vmem:[#allocation5 + $0x230] sm:$0xff]
        %v631 = vld [vmem:[#allocation5 + $0x238] sm:$0xff]
        %v632 = vld [vmem:[#allocation5 + $0x240] sm:$0xff]
        %v633 = vld [vmem:[#allocation5 + $0x248] sm:$0xff]
        %v634 = vld [vmem:[#allocation5 + $0x250] sm:$0xff]
        %v635 = vld [vmem:[#allocation5 + $0x258] sm:$0xff]
        %v636 = vld [vmem:[#allocation5 + $0x260] sm:$0xff]
        %v637 = vld [vmem:[#allocation5 + $0x268] sm:$0xff]
        %v638 = vld [vmem:[#allocation5 + $0x270] sm:$0xff]
        %v639 = vld [vmem:[#allocation5 + $0x278] sm:$0xff]
        %v640 = vld [vmem:[#allocation5 + $0x280] sm:$0xff]
        %v641 = vld [vmem:[#allocation5 + $0x288] sm:$0xff]
        %v642 = vld [vmem:[#allocation5 + $0x290] sm:$0xff]
        %v643 = vld [vmem:[#allocation5 + $0x298] sm:$0xff]
        %v644 = vld [vmem:[#allocation5 + $0x2a0] sm:$0xff]
        %v645 = vld [vmem:[#allocation5 + $0x2a8] sm:$0xff]
        %v646 = vld [vmem:[#allocation5 + $0x2b0] sm:$0xff]
        %v647 = vld [vmem:[#allocation5 + $0x2b8] sm:$0xff]
        %v648 = vld [vmem:[#allocation5 + $0x2c0] sm:$0xff]
        %v649 = vld [vmem:[#allocation5 + $0x2c8] sm:$0xff]
        %v650 = vld [vmem:[#allocation5 + $0x2d0] sm:$0xff]
        %v651 = vld [vmem:[#allocation5 + $0x2d8] sm:$0xff]
        %v652 = vld [vmem:[#allocation5 + $0x2e0] sm:$0xff]
        %v653 = vld [vmem:[#allocation5 + $0x2e8] sm:$0xff]
        %v654 = vld [vmem:[#allocation5 + $0x2f0] sm:$0xff]
        %v655 = vld [vmem:[#allocation5 + $0x2f8] sm:$0xff]
        %v656 = vld [vmem:[#allocation5 + $0x300] sm:$0xff]
        %v657 = vld [vmem:[#allocation5 + $0x308] sm:$0xff]
        %v658 = vld [vmem:[#allocation5 + $0x310] sm:$0xff]
        %v659 = vld [vmem:[#allocation5 + $0x318] sm:$0xff]
        %v660 = vld [vmem:[#allocation5 + $0x320] sm:$0xff]
        %v661 = vld [vmem:[#allocation5 + $0x328] sm:$0xff]
        %v662 = vld [vmem:[#allocation5 + $0x330] sm:$0xff]
        %v663 = vld [vmem:[#allocation5 + $0x338] sm:$0xff]
        %v664 = vld [vmem:[#allocation5 + $0x340] sm:$0xff]
        %v665 = vld [vmem:[#allocation5 + $0x348] sm:$0xff]
        %v666 = vld [vmem:[#allocation5 + $0x350] sm:$0xff]
        %v667 = vld [vmem:[#allocation5 + $0x358] sm:$0xff]
        %v668 = vld [vmem:[#allocation5 + $0x360] sm:$0xff]
        %v669 = vld [vmem:[#allocation5 + $0x368] sm:$0xff]
        %v670 = vld [vmem:[#allocation5 + $0x370] sm:$0xff]
        %v671 = vld [vmem:[#allocation5 + $0x378] sm:$0xff]
        %v672 = vld [vmem:[#allocation5 + $0x380] sm:$0xff]
        %v673 = vld [vmem:[#allocation5 + $0x388] sm:$0xff]
        %v674 = vld [vmem:[#allocation5 + $0x390] sm:$0xff]
        %v675 = vld [vmem:[#allocation5 + $0x398] sm:$0xff]
        %v676 = vld [vmem:[#allocation5 + $0x3a0] sm:$0xff]
        %v677 = vld [vmem:[#allocation5 + $0x3a8] sm:$0xff]
        %v678 = vld [vmem:[#allocation5 + $0x3b0] sm:$0xff]
        %v679 = vld [vmem:[#allocation5 + $0x3b8] sm:$0xff]
        %v680 = vld [vmem:[#allocation5 + $0x3c0] sm:$0xff]
        %v681 = vld [vmem:[#allocation5 + $0x3c8] sm:$0xff]
        %v682 = vld [vmem:[#allocation5 + $0x3d0] sm:$0xff]
        %v683 = vld [vmem:[#allocation5 + $0x3d8] sm:$0xff]
        %v684 = vld [vmem:[#allocation5 + $0x3e0] sm:$0xff]
        %v685 = vld [vmem:[#allocation5 + $0x3e8] sm:$0xff]
        %v686 = vld [vmem:[#allocation5 + $0x3f0] sm:$0xff]
        %v687 = vld [vmem:[#allocation5 + $0x3f8] sm:$0xff]
        %688 = vmatprep.subr.mxu0 %v591
        %689 = vmatpush1.msra.mxu0 %v590
        %690 = vmatprep.subr.mxu0 %v589
        %691 = vmatpush1.msra.mxu0 %v588
        %692 = vmatprep.subr.mxu0 %v587
        %693 = vmatpush1.msra.mxu0 %v586
        %694 = vmatprep.subr.mxu0 %v585
        %695 = vmatpush1.msra.mxu0 %v584
        %696 = vmatprep.subr.mxu0 %v583
        %697 = vmatpush1.msra.mxu0 %v582
        %698 = vmatprep.subr.mxu0 %v581
        %699 = vmatpush1.msra.mxu0 %v580
        %700 = vmatprep.subr.mxu0 %v579
        %701 = vmatpush1.msra.mxu0 %v578
        %702 = vmatprep.subr.mxu0 %v577
        %703 = vmatpush1.msra.mxu0 %v576
        %704 = vmatprep.subr.mxu0 %v575
        %705 = vmatpush1.msra.mxu0 %v574
        %706 = vmatprep.subr.mxu0 %v573
        %707 = vmatpush1.msra.mxu0 %v572
        %708 = vmatprep.subr.mxu0 %v571
        %709 = vmatpush1.msra.mxu0 %v570
        %710 = vmatprep.subr.mxu0 %v569
        %711 = vmatpush1.msra.mxu0 %v568
        %712 = vmatprep.subr.mxu0 %v567
        %713 = vmatpush1.msra.mxu0 %v566
        %714 = vmatprep.subr.mxu0 %v565
        %715 = vmatpush1.msra.mxu0 %v564
        %716 = vmatprep.subr.mxu0 %v563
        %717 = vmatpush1.msra.mxu0 %v562
        %718 = vmatprep.subr.mxu0 %v561
        %719 = vmatpush1.msra.mxu0 %v560
        %720 = vmatprep.subr.mxu0 %v623
        %721 = vmatpush2.msra.mxu0 %v622
        %722 = vmatprep.subr.mxu0 %v621
        %723 = vmatpush2.msra.mxu0 %v620
        %724 = vmatprep.subr.mxu0 %v619
        %725 = vmatpush2.msra.mxu0 %v618
        %726 = vmatprep.subr.mxu0 %v617
        %727 = vmatpush2.msra.mxu0 %v616
        %728 = vmatprep.subr.mxu0 %v615
        %729 = vmatpush2.msra.mxu0 %v614
        %730 = vmatprep.subr.mxu0 %v613
        %731 = vmatpush2.msra.mxu0 %v612
        %732 = vmatprep.subr.mxu0 %v611
        %733 = vmatpush2.msra.mxu0 %v610
        %734 = vmatprep.subr.mxu0 %v609
        %735 = vmatpush2.msra.mxu0 %v608
        %736 = vmatprep.subr.mxu0 %v607
        %737 = vmatpush2.msra.mxu0 %v606
        %738 = vmatprep.subr.mxu0 %v605
        %739 = vmatpush2.msra.mxu0 %v604
        %740 = vmatprep.subr.mxu0 %v603
        %741 = vmatpush2.msra.mxu0 %v602
        %742 = vmatprep.subr.mxu0 %v601
        %743 = vmatpush2.msra.mxu0 %v600
        %744 = vmatprep.subr.mxu0 %v599
        %745 = vmatpush2.msra.mxu0 %v598
        %746 = vmatprep.subr.mxu0 %v597
        %747 = vmatpush2.msra.mxu0 %v596
        %748 = vmatprep.subr.mxu0 %v595
        %749 = vmatpush2.msra.mxu0 %v594
        %750 = vmatprep.subr.mxu0 %v593
        %751 = vmatpush2.msra.mxu0 %v592
        %752 = vmatprep.mubr.f32.mxu0 %v547
        %753 = vmatmul.mubr.f32.gmra.mxu0 %v546
        %v754 = vpop.f32.mrf.mxu0
        %v755 = vadd.f32 0.0, %v754
        %v756 = vpop.f32.mrf.mxu0
        %v757 = vadd.f32 0.0, %v756
        %758 = vdwg.mxu0
        %759 = vmatprep.subr.mxu0 %v655
        %760 = vmatpush1.msra.mxu0 %v654
        %761 = vmatprep.subr.mxu0 %v653
        %762 = vmatpush1.msra.mxu0 %v652
        %763 = vmatprep.subr.mxu0 %v651
        %764 = vmatpush1.msra.mxu0 %v650
        %765 = vmatprep.subr.mxu0 %v649
        %766 = vmatpush1.msra.mxu0 %v648
        %767 = vmatprep.subr.mxu0 %v647
        %768 = vmatpush1.msra.mxu0 %v646
        %769 = vmatprep.subr.mxu0 %v645
        %770 = vmatpush1.msra.mxu0 %v644
        %771 = vmatprep.subr.mxu0 %v643
        %772 = vmatpush1.msra.mxu0 %v642
        %773 = vmatprep.subr.mxu0 %v641
        %774 = vmatpush1.msra.mxu0 %v640
        %775 = vmatprep.subr.mxu0 %v639
        %776 = vmatpush1.msra.mxu0 %v638
        %777 = vmatprep.subr.mxu0 %v637
        %778 = vmatpush1.msra.mxu0 %v636
        %779 = vmatprep.subr.mxu0 %v635
        %780 = vmatpush1.msra.mxu0 %v634
        %781 = vmatprep.subr.mxu0 %v633
        %782 = vmatpush1.msra.mxu0 %v632
        %783 = vmatprep.subr.mxu0 %v631
        %784 = vmatpush1.msra.mxu0 %v630
        %785 = vmatprep.subr.mxu0 %v629
        %786 = vmatpush1.msra.mxu0 %v628
        %787 = vmatprep.subr.mxu0 %v627
        %788 = vmatpush1.msra.mxu0 %v626
        %789 = vmatprep.subr.mxu0 %v625
        %790 = vmatpush1.msra.mxu0 %v624
        %791 = vmatprep.subr.mxu0 %v687
        %792 = vmatpush2.msra.mxu0 %v686
        %793 = vmatprep.subr.mxu0 %v685
        %794 = vmatpush2.msra.mxu0 %v684
        %795 = vmatprep.subr.mxu0 %v683
        %796 = vmatpush2.msra.mxu0 %v682
        %797 = vmatprep.subr.mxu0 %v681
        %798 = vmatpush2.msra.mxu0 %v680
        %799 = vmatprep.subr.mxu0 %v679
        %800 = vmatpush2.msra.mxu0 %v678
        %801 = vmatprep.subr.mxu0 %v677
        %802 = vmatpush2.msra.mxu0 %v676
        %803 = vmatprep.subr.mxu0 %v675
        %804 = vmatpush2.msra.mxu0 %v674
        %805 = vmatprep.subr.mxu0 %v673
        %806 = vmatpush2.msra.mxu0 %v672
        %807 = vmatprep.subr.mxu0 %v671
        %808 = vmatpush2.msra.mxu0 %v670
        %809 = vmatprep.subr.mxu0 %v669
        %810 = vmatpush2.msra.mxu0 %v668
        %811 = vmatprep.subr.mxu0 %v667
        %812 = vmatpush2.msra.mxu0 %v666
        %813 = vmatprep.subr.mxu0 %v665
        %814 = vmatpush2.msra.mxu0 %v664
        %815 = vmatprep.subr.mxu0 %v663
        %816 = vmatpush2.msra.mxu0 %v662
        %817 = vmatprep.subr.mxu0 %v661
        %818 = vmatpush2.msra.mxu0 %v660
        %819 = vmatprep.subr.mxu0 %v659
        %820 = vmatpush2.msra.mxu0 %v658
        %821 = vmatprep.subr.mxu0 %v657
        %822 = vmatpush2.msra.mxu0 %v656
        %823 = vmatprep.mubr.f32.mxu0 %v559
        %824 = vmatmul.mubr.f32.gmra.mxu0 %v553
        %v825 = vpop.f32.mrf.mxu0
        %v826 = vadd.f32 %v755, %v825
        %v827 = vpop.f32.mrf.mxu0
        %v828 = vadd.f32 %v757, %v827
        %829 = vdwg.mxu0
        %v830 = vxor.u32 %v826, 2147483648
        %v831 = vxor.u32 %v828, 2147483648
        %v832 = vmul.f32 %v830, 1.442695
        %v833 = vpow.pop %v832
        %v834 = vmul.f32 %v831, 1.442695
        %v835 = vpow.pop %v834
        %v836 = vadd.f32 %v833, 1.0
        %v837 = vadd.f32 %v835, 1.0
        %v838 = vrcp.pop %v836
        %v839 = vmul.f32 1.0, %v838
        %v840 = vrcp.pop %v837
        %v841 = vmul.f32 1.0, %v840
        %v842 = vlaneseq
        %v843 = vshrl.u32 %v842, 7
        %v844 = vsub.s32 0, %v843
        %v845 = vrot.slane %v839, %v844
        %v846 = vlaneseq
        %v847 = vshrl.u32 %v846, 7
        %v848 = vsub.s32 0, %v847
        %v849 = vrot.slane %v841, %v848
        %v850 = vmul.f32 %v531, %v845
        %v851 = vmul.f32 %v532, %v849
        %852 = vst [vmem:[%s282] sm:$0xff] %v850
        %853 = vst [vmem:[%s282 + $0x8] sm:$0xff] %v851
        %s854 = sand.u32 %s163, 1
        %s855 = scalar_lea.sflag [#allocation4], %s854
        %s856 = sand.u32 %s163, 1
        %s857 = smul.addr %s856, 16
        %s858 = scalar_lea.vmem [#allocation7], %s857
        // Predicated region
        $region53: #{tpu_custom_call.1} parent=43 // pred_check
          %p859 = pneg %p173
        $region54: #{tpu_custom_call.1} parent=43 // pred_check_branch
          %861 = sbr.rel (%p859) target = $region56
        $region55: #{tpu_custom_call.1} parent=43 // pred_region
          %s863 = ssub.s32 256, 256
          %864 = vsyncadd %s855, %s863
          %s865 = smul.addr %s24, 2
          %s866 = smul.addr %s865, 128
          %s867 = scalar_lea.hbm %s6, %s866
          %s869 = sshll.u32 %s858, 4
          %s870 = int_to_ptr.vmem [resolvable:$true] %s869
          %872 = dma.vmem_to_hbm [thread:$0]  %s870, 256, %s867, %s855
        $region56: #{tpu_custom_call.1} parent=43 // pred_fallthru
          _
      $region44: #{tpu_custom_call.1} parent=5 // pred_fallthru
        _
      %p873 = scmp.le.s32.totalorder 2, %s19
      // Predicated region
      $region57: #{tpu_custom_call.1} parent=5 // pred_check
        %p874 = pneg %p873
      $region58: #{tpu_custom_call.1} parent=5 // pred_check_branch
        %876 = sbr.rel (%p874) target = $region60
      $region59: #{tpu_custom_call.1} parent=5 // pred_region
        %s877 = ssub.s32 %s19, 2
        // Predicated region
        $region61: #{tpu_custom_call.1} parent=59 // pred_check
          %p878 = pneg %p179
        $region62: #{tpu_custom_call.1} parent=59 // pred_check_branch
          %880 = sbr.rel (%p878) target = $region64
        $region63: #{tpu_custom_call.1} parent=59 // pred_region
          %s881 = sand.u32 %s164, 1
          %s882 = scalar_lea.sflag [#allocation4], %s881
          %s883 = sand.u32 %s164, 1
          %s884 = smul.addr %s883, 16
          %s885 = scalar_lea.vmem [#allocation7], %s884
          %886 = dma.done %s882, 256
        $region64: #{tpu_custom_call.1} parent=59 // pred_fallthru
          _
      $region60: #{tpu_custom_call.1} parent=5 // pred_fallthru
        _
    $region6: #{tpu_custom_call.1} parent=1 // loop_footer
      %s23 = sadd.s32 1, %s19
    $region7: #{tpu_custom_call.1} parent=1 // loop_footer_branch
      %18 = sbr.rel target = $region3
    $region8: #{tpu_custom_call.1} parent=1 // loop_exit
      _
    %887 = vsyncpa [#allocation3], 1
    %s888 = scalar_lea.sflag [#allocation3], 1
    %889 = vsyncpa %s888, 1
    %890 = vsyncpa [#allocation6], 1
    %891 = vsyncpa [#allocation4], 1
    %s892 = scalar_lea.sflag [#allocation4], 1
    %893 = vsyncpa %s892, 1

</llo_original>
